<compile_context>
chip_gen: v7x
topology: tpu7x:2x2x1
jax: 0.10.0
libtpu: 0.0.40
codegen_flags: <defaults>
</compile_context>

<pallas_src>
import functools

import jax
import jax.numpy as jnp
from jax.experimental import pallas as pl
from jax.experimental.pallas import tpu as pltpu

_LANES = 128          # vreg lane width (last dim)
_SUBLANES = 8         # f32 vreg sublane height (second-to-last dim)
_MAX_BLOCK_ROWS = 2048  # 2048 x 128 x 4 B = 1 MiB per f32 block


def _elementwise_kernel(py_func, x_ref, o_ref):
    """Apply py_func to one lane-dense (block_rows, 128) tile."""
    o_ref[...] = py_func(x_ref[...]).astype(o_ref.dtype)


def _round_up(x, m):
    return ((x + m - 1) // m) * m


def make_custom_module(py_func):
    """CustomModule(py_func) -> forward(x) backed by a tiled Pallas kernel.

    py_func must be a JAX-traceable elementwise (shape-preserving) function.
    """

    @jax.jit
    def forward(x):
        orig_shape = x.shape
        n = x.size

        # Output dtype of py_func (supports dtype-changing elementwise funcs).
        out_dtype = jax.eval_shape(
            py_func, jax.ShapeDtypeStruct((_SUBLANES, _LANES), x.dtype)).dtype

        # ---- layout plumbing (outside the kernel): lane-dense 2-D slab ----
        rows = pl.cdiv(n, _LANES)
        num_blocks = pl.cdiv(rows, _MAX_BLOCK_ROWS)
        block_rows = _round_up(pl.cdiv(rows, num_blocks), _SUBLANES)
        grid_rows = pl.cdiv(rows, block_rows)
        rows_pad = grid_rows * block_rows

        flat = x.reshape(-1)
        pad = rows_pad * _LANES - n
        if pad:
            flat = jnp.pad(flat, (0, pad))
        x2d = flat.reshape(rows_pad, _LANES)

        # Advisory cost (mem-bound elementwise): one read + one write of the slab.
        cost = pl.CostEstimate(
            flops=rows_pad * _LANES,
            transcendentals=0,
            bytes_accessed=rows_pad * _LANES
            * (x2d.dtype.itemsize + jnp.dtype(out_dtype).itemsize),
        )

        out2d = pl.pallas_call(
            functools.partial(_elementwise_kernel, py_func),
            out_shape=jax.ShapeDtypeStruct((rows_pad, _LANES), out_dtype),
            grid=(grid_rows,),
            in_specs=[pl.BlockSpec((block_rows, _LANES), lambda i: (i, 0))],
            out_specs=pl.BlockSpec((block_rows, _LANES), lambda i: (i, 0)),
            compiler_params=pltpu.CompilerParams(
                dimension_semantics=("parallel",)),
            cost_estimate=cost,
        )(x2d)

        return out2d.reshape(-1)[:n].reshape(orig_shape)

    return forward


if __name__ == "__main__":
    key = jax.random.PRNGKey(0)
    k1, k2 = jax.random.split(key)

    # The function CustomModule wraps (elementwise, JAX-traceable): SiLU.
    py_func = lambda t: t * jax.nn.sigmoid(t)
    module = make_custom_module(py_func)

    # Small shapes consistent with the module (image-like activation tensor).
    x = jax.random.normal(k1, (2, 4, 16, 16), dtype=jnp.float32)
    y = jax.block_until_ready(module(x))
    y_ref = py_func(x)
    assert y.shape == x.shape and y.dtype == y_ref.dtype
    assert jnp.allclose(y, y_ref, atol=1e-5, rtol=1e-5)

    # Non-tile-aligned shape exercises the pad / slice path.
    x2 = jax.random.normal(k2, (3, 5, 7), dtype=jnp.float32)
    y2 = jax.block_until_ready(module(x2))
    assert jnp.allclose(y2, py_func(x2), atol=1e-5, rtol=1e-5)

    print("KERNEL_OK")
</pallas_src>

<mosaic_0001>
module attributes {stable_mosaic.version = 11 : i64} {
  func.func @_elementwise_kernel(%arg0: i32, %arg1: memref<16x128xf32, #tpu.memory_space<vmem>>, %arg2: memref<16x128xf32, #tpu.memory_space<vmem>>) attributes {dimension_semantics = [#tpu.dimension_semantics<parallel>], iteration_bounds = array<i64: 1>, scalar_prefetch = 0 : i64, scratch_operands = 0 : i64, tpu.core_type = #tpu.core_type<tc>, window_params = [{transform_indices = @transform_0, window_bounds = array<i64: 16, 128>}, {transform_indices = @transform_1, window_bounds = array<i64: 16, 128>}]} {
    %c0 = arith.constant 0 : index
    %c0_0 = arith.constant 0 : index
    %0 = vector.load %arg1[%c0, %c0_0] : memref<16x128xf32, #tpu.memory_space<vmem>>, vector<16x128xf32>
    %1 = arith.negf %0 : vector<16x128xf32>
    %2 = math.exp %1 : vector<16x128xf32>
    %cst = arith.constant 1.000000e+00 : f32
    %3 = vector.broadcast %cst : f32 to vector<16x128xf32>
    %4 = arith.addf %3, %2 : vector<16x128xf32>
    %5 = arith.divf %3, %4 : vector<16x128xf32>
    %6 = arith.mulf %0, %5 : vector<16x128xf32>
    %c0_1 = arith.constant 0 : index
    %c0_2 = arith.constant 0 : index
    %7 = vector.load %arg2[%c0_1, %c0_2] : memref<16x128xf32, #tpu.memory_space<vmem>>, vector<16x128xf32>
    tpu.vector_store %arg2[%c0_1, %c0_2], %6 {strides = array<i32>} : memref<16x128xf32, #tpu.memory_space<vmem>>, vector<16x128xf32>,
    return
  }
  func.func @transform_0(%arg0: i32) -> (i32, i32) {
    %c0_i32 = arith.constant 0 : i32
    %c0_i32_0 = arith.constant 0 : i32
    return %arg0, %c0_i32 : i32, i32
  }
  func.func @transform_1(%arg0: i32) -> (i32, i32) {
    %c0_i32 = arith.constant 0 : i32
    %c0_i32_0 = arith.constant 0 : i32
    return %arg0, %c0_i32 : i32, i32
  }
}

</mosaic_0001>

<llo_original>
// kernel: forward.1
$region0: #{forward.1}
  #allocation0 [shape = 'u32[]', space=smem, size = 0x4, offset = 0x4, fixed_abs, tag = 'smem constant byte address 0x4 - core index']
  #allocation1 [shape = 'u32[144,128]{1,0:T(1,128)}', space=vmem, size = 0x12000, scoped, tag = 'internal scratch']
  %s0 = inlined_call_operand.vmem [shape: f32[16,128], index: 0, kind: input, shape index: {}]
  %s1 = inlined_call_operand.vmem [shape: f32[16,128], index: 1, kind: output, shape index: {}]
  %s2 = sld [smem:[#allocation0]]
  $region14: #{forward.1} parent=0
    _
  %s4 = ssub.s32 1, %s2
  %s5 = scalar_select 0, %s4, %s2
  // Predicated region
  $region2: #{forward.1} parent=0 // pred_check
    _
  $region3: #{forward.1} parent=0 // pred_check_branch
    %7 = sbr.rel (0) target = $region5
  $region4: #{forward.1} parent=0 // pred_region
    _
  $region5: #{forward.1} parent=0 // pred_fallthru
    _
  %v8 = vld [vmem:[%s0] sm:$0xff]
  %v9 = vld [vmem:[%s0 + $0x8] sm:$0xff]
  %v10 = vxor.u32 %v8, 2147483648
  %v11 = vxor.u32 %v9, 2147483648
  %v12 = vmul.f32 %v10, 1.442695
  %v13 = vpow.pop %v12
  %v14 = vmul.f32 %v11, 1.442695
  %v15 = vpow.pop %v14
  %v16 = vadd.f32 %v13, 1.0
  %v17 = vadd.f32 %v15, 1.0
  %v18 = vrcp.pop %v16
  %v19 = vmul.f32 1.0, %v18
  %v20 = vrcp.pop %v17
  %v21 = vmul.f32 1.0, %v20
  %v22 = vmul.f32 %v8, %v19
  %v23 = vmul.f32 %v9, %v21
  %24 = vst [vmem:[%s1] sm:$0xff] %v22
  %25 = vst [vmem:[%s1 + $0x8] sm:$0xff] %v23
  // Predicated region
  $region6: #{forward.1} parent=0 // pred_check
    _
  $region7: #{forward.1} parent=0 // pred_check_branch
    %27 = sbr.rel (0) target = $region9
  $region8: #{forward.1} parent=0 // pred_region
    _
  $region9: #{forward.1} parent=0 // pred_fallthru
    _
  // Predicated region
  $region10: #{forward.1} parent=0 // pred_check
    _
  $region11: #{forward.1} parent=0 // pred_check_branch
    %29 = sbr.rel (0) target = $region13
  $region12: #{forward.1} parent=0 // pred_region
    _
  $region13: #{forward.1} parent=0 // pred_fallthru
    _

</llo_original>
